<compile_context>
chip_gen: v7x
topology: tpu7x:2x2x1
jax: 0.10.0
libtpu: 0.0.40
codegen_flags: <defaults>
</compile_context>

<pallas_src>
import functools

import jax
import jax.numpy as jnp
from jax.experimental import pallas as pl
from jax.experimental.pallas import tpu as pltpu


def _pair(v):
    return tuple(v) if isinstance(v, (tuple, list)) else (v, v)


def _quadruple(v):
    return tuple(v) if isinstance(v, (tuple, list)) else (v, v, v, v)


# ----------------------------- median network ------------------------------


def _compare_exchange(vals, i, j):
    a, b = vals[i], vals[j]
    vals[i] = jnp.minimum(a, b)
    vals[j] = jnp.maximum(a, b)


def _min_max_network(vals):
    """In-place CE network leaving min(vals) at vals[0], max(vals) at vals[-1].

    Cost: 3*s/2 - 2 CEs (even s), 3*(s-1)/2 (odd s) -- same as the classic
    mnmx networks used in GPU median filters.
    """
    s = len(vals)
    if s < 2:
        return
    # pair up neighbours
    for i in range(0, (s // 2) * 2, 2):
        _compare_exchange(vals, i, i + 1)
    # fold all pair-minima (plus the unpaired tail element, if any) into slot 0
    min_slots = list(range(2, (s // 2) * 2, 2))
    if s % 2 == 1:
        min_slots.append(s - 1)
    for j in min_slots:
        _compare_exchange(vals, 0, j)
    # fold all pair-maxima into the last slot
    for j in range(1, s - 1, 2):
        _compare_exchange(vals, j, s - 1)


def _odd_even_sort(vals):
    s = len(vals)
    for p in range(s):
        for i in range(p % 2, s - 1, 2):
            _compare_exchange(vals, i, i + 1)


def _lower_median(views):
    """Forgetful median-selection network over a list of equal-shape arrays.

    Computes sorted(views)[(n-1)//2] elementwise (torch.median's lower median)
    with far fewer compare-exchanges than a full sort: 20 CEs for n=9 (vs 36),
    132 for n=25 (vs 300).  At most max((n+3)//2, n-(n-1)//2+1) arrays are
    live at any time.
    """
    n = len(views)
    m = (n - 1) // 2
    # Working-set size from which both the current min and max provably cannot
    # be the lower median and may therefore be discarded.
    t0 = max(m + 2, n - m + 1)
    if t0 >= n:
        work = list(views)
        dropped_low = 0
    else:
        work = list(views[:t0])
        dropped_low = 0
        for v in views[t0:]:
            _min_max_network(work)
            work = work[1:-1]          # discard current min and max
            dropped_low += 1
            work.append(v)
    _odd_even_sort(work)               # final set is tiny (3 or 4 for k >= 3)
    return work[m - dropped_low]


# ------------------------------ Pallas kernel -------------------------------


def _make_median_kernel(kh, kw, sh, sw, Ho, Wo):
    """Kernel over one (Hp, Wp, C_block) channels-last block."""

    def kernel(x_ref, o_ref):
        x = x_ref[...]                    # (Hp, Wp, Cb); channels on lanes
        cb = x.shape[2]
        views = []
        for di in range(kh):
            for dj in range(kw):
                # Window shifts are on the leading / sublane axes only; the
                # lane (channel) axis is never sliced.
                views.append(
                    jax.lax.slice(
                        x,
                        (di, dj, 0),
                        (di + (Ho - 1) * sh + 1, dj + (Wo - 1) * sw + 1, cb),
                        (sh, sw, 1),
                    )
                )
        o_ref[...] = _lower_median(views)

    return kernel


@functools.partial(jax.jit, static_argnums=(1, 2, 3, 4))
def _median_pool2d_impl(x, k, s, pad4, same):
    kh, kw = k
    sh, sw = s
    N, C, H, W = x.shape

    # ---- padding (matches MedianPool2d._padding) ----
    if same:
        ph = max(kh - sh, 0) if H % sh == 0 else max(kh - H % sh, 0)
        pw = max(kw - sw, 0) if W % sw == 0 else max(kw - W % sw, 0)
        p_l, p_t = pw // 2, ph // 2
        p_r, p_b = pw - p_l, ph - p_t
    else:
        p_l, p_r, p_t, p_b = pad4

    xp = x
    if p_l or p_r or p_t or p_b:
        xp = jnp.pad(x, ((0, 0), (0, 0), (p_t, p_b), (p_l, p_r)), mode="reflect")
    Hp, Wp = H + p_t + p_b, W + p_l + p_r
    Ho = (Hp - kh) // sh + 1
    Wo = (Wp - kw) // sw + 1
    NC = N * C

    # ---- lane-dense channels-last layout: (Hp, Wp, N*C) ----
    xcl = jnp.transpose(xp, (2, 3, 0, 1)).reshape(Hp, Wp, NC)

    # ---- channel-block (lane) sizing against a conservative VMEM budget ----
    n_win = kh * kw
    m = (n_win - 1) // 2
    t0 = max(m + 2, n_win - m + 1)       # live arrays in the median network
    itemsize = jnp.dtype(x.dtype).itemsize
    # per-channel bytes per step: double-buffered in/out + live working set
    per_ch = (2 * Hp * Wp + (t0 + 4) * Ho * Wo) * itemsize
    budget = 12 * 1024 * 1024
    if NC <= 128 or NC * per_ch <= budget:
        c_block = NC                      # single full-extent lane block
    else:
        c_block = max(128, (min(budget // per_ch, NC) // 128) * 128)
    nc_pad = ((NC + c_block - 1) // c_block) * c_block
    if nc_pad != NC:
        xcl = jnp.pad(xcl, ((0, 0), (0, 0), (0, nc_pad - NC)))
    grid_c = nc_pad // c_block

    # TODO(synk): for very large H*W with few channels the whole padded plane
    # still has to fit in VMEM (no halo-tiling of H here); that case would
    # need manual overlapping DMA.
    vmem_limit = int(
        min(max(32 * 1024 * 1024, 2 * c_block * per_ch), 64 * 1024 * 1024)
    )

    kernel = _make_median_kernel(kh, kw, sh, sw, Ho, Wo)
    out_cl = pl.pallas_call(
        kernel,
        out_shape=jax.ShapeDtypeStruct((Ho, Wo, nc_pad), x.dtype),
        grid_spec=pltpu.PrefetchScalarGridSpec(
            num_scalar_prefetch=0,
            grid=(grid_c,),
            in_specs=[pl.BlockSpec((Hp, Wp, c_block), lambda c: (0, 0, c))],
            out_specs=pl.BlockSpec((Ho, Wo, c_block), lambda c: (0, 0, c)),
        ),
        compiler_params=pltpu.CompilerParams(
            dimension_semantics=("parallel",),
            vmem_limit_bytes=vmem_limit,
        ),
    )(xcl)

    out = out_cl[:, :, :NC].reshape(Ho, Wo, N, C)
    return jnp.transpose(out, (2, 3, 0, 1))


def median_pool2d(x, kernel_size=3, stride=1, padding=0, same=False):
    """JAX/Pallas equivalent of MedianPool2d.forward (x is NCHW)."""
    return _median_pool2d_impl(
        x, _pair(kernel_size), _pair(stride), _quadruple(padding), bool(same)
    )


# ------------------------------ reference -----------------------------------


def _reference_median_pool2d(x, kernel_size=3, stride=1, padding=0, same=False):
    """Pure-JAX reference (same semantics) for correctness checking."""
    kh, kw = _pair(kernel_size)
    sh, sw = _pair(stride)
    N, C, H, W = x.shape
    if same:
        ph = max(kh - sh, 0) if H % sh == 0 else max(kh - H % sh, 0)
        pw = max(kw - sw, 0) if W % sw == 0 else max(kw - W % sw, 0)
        p_l, p_t = pw // 2, ph // 2
        p_r, p_b = pw - p_l, ph - p_t
    else:
        p_l, p_r, p_t, p_b = _quadruple(padding)
    xp = jnp.pad(x, ((0, 0), (0, 0), (p_t, p_b), (p_l, p_r)), mode="reflect")
    Hp, Wp = xp.shape[2], xp.shape[3]
    Ho = (Hp - kh) // sh + 1
    Wo = (Wp - kw) // sw + 1
    views = []
    for di in range(kh):
        for dj in range(kw):
            views.append(
                jax.lax.slice(
                    xp,
                    (0, 0, di, dj),
                    (N, C, di + (Ho - 1) * sh + 1, dj + (Wo - 1) * sw + 1),
                    (1, 1, sh, sw),
                )
            )
    stacked = jnp.stack(views, axis=-1)
    return jnp.sort(stacked, axis=-1)[..., (kh * kw - 1) // 2]


if __name__ == "__main__":
    key = jax.random.PRNGKey(0)
    x = jax.random.normal(key, (2, 4, 16, 16), dtype=jnp.float32)

    # Module defaults: kernel_size=3, stride=1, padding=0, same=False.
    out = median_pool2d(x)
    out = jax.block_until_ready(out)
    assert out.shape == (2, 4, 14, 14), out.shape
    ref = _reference_median_pool2d(x)
    assert jnp.allclose(out, ref, atol=1e-6, rtol=1e-6)

    # Reflect padding + heavily duplicated values (exercises tie handling).
    xq = jnp.round(x * 2.0)
    out_p = median_pool2d(xq, kernel_size=3, stride=1, padding=(1, 1, 1, 1))
    ref_p = _reference_median_pool2d(xq, 3, 1, (1, 1, 1, 1))
    assert out_p.shape == (2, 4, 16, 16), out_p.shape
    assert jnp.allclose(out_p, ref_p, atol=1e-6, rtol=1e-6)

    # 'same' padding mode.
    out_s = median_pool2d(x, kernel_size=3, stride=1, same=True)
    ref_s = _reference_median_pool2d(x, 3, 1, 0, True)
    assert jnp.allclose(out_s, ref_s, atol=1e-6, rtol=1e-6)

    # Even window count (lower-median convention, full-sort fallback path).
    out_e = median_pool2d(x, kernel_size=2, stride=1, padding=0)
    ref_e = _reference_median_pool2d(x, 2, 1, 0)
    assert jnp.allclose(out_e, ref_e, atol=1e-6, rtol=1e-6)

    print("KERNEL_OK")
</pallas_src>

<mosaic_0001>
module attributes {stable_mosaic.version = 11 : i64} {
  func.func @kernel(%arg0: i32, %arg1: memref<16x16x8xf32, #tpu.memory_space<vmem>>, %arg2: memref<14x14x8xf32, #tpu.memory_space<vmem>>) attributes {dimension_semantics = [#tpu.dimension_semantics<parallel>], iteration_bounds = array<i64: 1>, scalar_prefetch = 0 : i64, scratch_operands = 0 : i64, tpu.core_type = #tpu.core_type<tc>, window_params = [{transform_indices = @transform_0, window_bounds = array<i64: 16, 16, 8>}, {transform_indices = @transform_1, window_bounds = array<i64: 14, 14, 8>}]} {
    %c0 = arith.constant 0 : index
    %c0_0 = arith.constant 0 : index
    %c0_1 = arith.constant 0 : index
    %0 = vector.load %arg1[%c0, %c0_0, %c0_1] : memref<16x16x8xf32, #tpu.memory_space<vmem>>, vector<16x16x8xf32>
    %1 = vector.extract_strided_slice %0 {offsets = [0, 0, 0], sizes = [14, 14, 8], strides = [1, 1, 1]} : vector<16x16x8xf32> to vector<14x14x8xf32>
    %2 = vector.extract_strided_slice %0 {offsets = [0, 1, 0], sizes = [14, 14, 8], strides = [1, 1, 1]} : vector<16x16x8xf32> to vector<14x14x8xf32>
    %3 = vector.extract_strided_slice %0 {offsets = [0, 2, 0], sizes = [14, 14, 8], strides = [1, 1, 1]} : vector<16x16x8xf32> to vector<14x14x8xf32>
    %4 = vector.extract_strided_slice %0 {offsets = [1, 0, 0], sizes = [14, 14, 8], strides = [1, 1, 1]} : vector<16x16x8xf32> to vector<14x14x8xf32>
    %5 = vector.extract_strided_slice %0 {offsets = [1, 1, 0], sizes = [14, 14, 8], strides = [1, 1, 1]} : vector<16x16x8xf32> to vector<14x14x8xf32>
    %6 = vector.extract_strided_slice %0 {offsets = [1, 2, 0], sizes = [14, 14, 8], strides = [1, 1, 1]} : vector<16x16x8xf32> to vector<14x14x8xf32>
    %7 = vector.extract_strided_slice %0 {offsets = [2, 0, 0], sizes = [14, 14, 8], strides = [1, 1, 1]} : vector<16x16x8xf32> to vector<14x14x8xf32>
    %8 = vector.extract_strided_slice %0 {offsets = [2, 1, 0], sizes = [14, 14, 8], strides = [1, 1, 1]} : vector<16x16x8xf32> to vector<14x14x8xf32>
    %9 = vector.extract_strided_slice %0 {offsets = [2, 2, 0], sizes = [14, 14, 8], strides = [1, 1, 1]} : vector<16x16x8xf32> to vector<14x14x8xf32>
    %10 = arith.minimumf %1, %2 : vector<14x14x8xf32>
    %11 = arith.maximumf %1, %2 : vector<14x14x8xf32>
    %12 = arith.minimumf %3, %4 : vector<14x14x8xf32>
    %13 = arith.maximumf %3, %4 : vector<14x14x8xf32>
    %14 = arith.minimumf %5, %6 : vector<14x14x8xf32>
    %15 = arith.maximumf %5, %6 : vector<14x14x8xf32>
    %16 = arith.minimumf %10, %12 : vector<14x14x8xf32>
    %17 = arith.maximumf %10, %12 : vector<14x14x8xf32>
    %18 = arith.maximumf %16, %14 : vector<14x14x8xf32>
    %19 = arith.minimumf %11, %15 : vector<14x14x8xf32>
    %20 = arith.maximumf %11, %15 : vector<14x14x8xf32>
    %21 = arith.minimumf %13, %20 : vector<14x14x8xf32>
    %22 = arith.minimumf %19, %17 : vector<14x14x8xf32>
    %23 = arith.maximumf %19, %17 : vector<14x14x8xf32>
    %24 = arith.minimumf %21, %18 : vector<14x14x8xf32>
    %25 = arith.maximumf %21, %18 : vector<14x14x8xf32>
    %26 = arith.minimumf %22, %24 : vector<14x14x8xf32>
    %27 = arith.maximumf %22, %24 : vector<14x14x8xf32>
    %28 = arith.maximumf %26, %7 : vector<14x14x8xf32>
    %29 = arith.minimumf %23, %28 : vector<14x14x8xf32>
    %30 = arith.maximumf %23, %28 : vector<14x14x8xf32>
    %31 = arith.minimumf %25, %30 : vector<14x14x8xf32>
    %32 = arith.minimumf %29, %27 : vector<14x14x8xf32>
    %33 = arith.maximumf %29, %27 : vector<14x14x8xf32>
    %34 = arith.minimumf %31, %8 : vector<14x14x8xf32>
    %35 = arith.maximumf %31, %8 : vector<14x14x8xf32>
    %36 = arith.maximumf %32, %34 : vector<14x14x8xf32>
    %37 = arith.minimumf %33, %35 : vector<14x14x8xf32>
    %38 = arith.minimumf %37, %36 : vector<14x14x8xf32>
    %39 = arith.maximumf %37, %36 : vector<14x14x8xf32>
    %40 = arith.minimumf %39, %9 : vector<14x14x8xf32>
    %41 = arith.maximumf %38, %40 : vector<14x14x8xf32>
    %c0_2 = arith.constant 0 : index
    %c0_3 = arith.constant 0 : index
    %c0_4 = arith.constant 0 : index
    %42 = vector.load %arg2[%c0_2, %c0_3, %c0_4] : memref<14x14x8xf32, #tpu.memory_space<vmem>>, vector<14x14x8xf32>
    tpu.vector_store %arg2[%c0_2, %c0_3, %c0_4], %41 {strides = array<i32>} : memref<14x14x8xf32, #tpu.memory_space<vmem>>, vector<14x14x8xf32>,
    return
  }
  func.func @transform_0(%arg0: i32) -> (i32, i32, i32) {
    %c0_i32 = arith.constant 0 : i32
    %c0_i32_0 = arith.constant 0 : i32
    %c0_i32_1 = arith.constant 0 : i32
    return %c0_i32, %c0_i32_0, %arg0 : i32, i32, i32
  }
  func.func @transform_1(%arg0: i32) -> (i32, i32, i32) {
    %c0_i32 = arith.constant 0 : i32
    %c0_i32_0 = arith.constant 0 : i32
    %c0_i32_1 = arith.constant 0 : i32
    return %c0_i32, %c0_i32_0, %arg0 : i32, i32, i32
  }
}

</mosaic_0001>

<llo_original>
// kernel: _median_pool2d_impl.1
$region0: #{_median_pool2d_impl.1}
  #allocation0 [shape = 'u32[]', space=smem, size = 0x4, offset = 0x4, fixed_abs, tag = 'smem constant byte address 0x4 - core index']
  #allocation1 [shape = 'u32[144,128]{1,0:T(1,128)}', space=vmem, size = 0x12000, scoped, tag = 'internal scratch']
  %s0 = inlined_call_operand.vmem [shape: f32[16,16,8], index: 0, kind: input, shape index: {}]
  %s1 = inlined_call_operand.vmem [shape: f32[14,14,8], index: 1, kind: output, shape index: {}]
  %s2 = sld [smem:[#allocation0]]
  $region14: #{_median_pool2d_impl.1} parent=0
    _
  %s4 = ssub.s32 1, %s2
  %s5 = scalar_select 0, %s4, %s2
  // Predicated region
  $region2: #{_median_pool2d_impl.1} parent=0 // pred_check
    _
  $region3: #{_median_pool2d_impl.1} parent=0 // pred_check_branch
    %7 = sbr.rel (0) target = $region5
  $region4: #{_median_pool2d_impl.1} parent=0 // pred_region
    _
  $region5: #{_median_pool2d_impl.1} parent=0 // pred_fallthru
    _
  %v8 = vld [vmem:[%s0] sm:$0xff]
  %v9 = vld [vmem:[%s0 + $0x8] sm:$0xff]
  %v10 = vld [vmem:[%s0 + $0x10] sm:$0xff]
  %v11 = vld [vmem:[%s0 + $0x18] sm:$0xff]
  %v12 = vld [vmem:[%s0 + $0x20] sm:$0xff]
  %v13 = vld [vmem:[%s0 + $0x28] sm:$0xff]
  %v14 = vld [vmem:[%s0 + $0x30] sm:$0xff]
  %v15 = vld [vmem:[%s0 + $0x38] sm:$0xff]
  %v16 = vld [vmem:[%s0 + $0x40] sm:$0xff]
  %v17 = vld [vmem:[%s0 + $0x48] sm:$0xff]
  %v18 = vld [vmem:[%s0 + $0x50] sm:$0xff]
  %v19 = vld [vmem:[%s0 + $0x58] sm:$0xff]
  %v20 = vld [vmem:[%s0 + $0x60] sm:$0xff]
  %v21 = vld [vmem:[%s0 + $0x68] sm:$0xff]
  %v22 = vld [vmem:[%s0 + $0x70] sm:$0xff]
  %v23 = vld [vmem:[%s0 + $0x78] sm:$0xff]
  %v24 = vld [vmem:[%s0 + $0x80] sm:$0xff]
  %v25 = vld [vmem:[%s0 + $0x88] sm:$0xff]
  %v26 = vld [vmem:[%s0 + $0x90] sm:$0xff]
  %v27 = vld [vmem:[%s0 + $0x98] sm:$0xff]
  %v28 = vld [vmem:[%s0 + $0xa0] sm:$0xff]
  %v29 = vld [vmem:[%s0 + $0xa8] sm:$0xff]
  %v30 = vld [vmem:[%s0 + $0xb0] sm:$0xff]
  %v31 = vld [vmem:[%s0 + $0xb8] sm:$0xff]
  %v32 = vld [vmem:[%s0 + $0xc0] sm:$0xff]
  %v33 = vld [vmem:[%s0 + $0xc8] sm:$0xff]
  %v34 = vld [vmem:[%s0 + $0xd0] sm:$0xff]
  %v35 = vld [vmem:[%s0 + $0xd8] sm:$0xff]
  %v36 = vld [vmem:[%s0 + $0xe0] sm:$0xff]
  %v37 = vld [vmem:[%s0 + $0xe8] sm:$0xff]
  %v38 = vld [vmem:[%s0 + $0xf0] sm:$0xff]
  %v39 = vld [vmem:[%s0 + $0xf8] sm:$0xff]
  %vm68 = vcmask 1046528
  %v69 = vrot.slane %v8, 1
  %v70 = vrot.slane %v9, 1
  %v71 = vsel %vm68, %v69, %v70
  %v72 = vrot.slane %v10, 1
  %v73 = vrot.slane %v11, 1
  %v74 = vsel %vm68, %v72, %v73
  %v75 = vrot.slane %v12, 1
  %v76 = vrot.slane %v13, 1
  %v77 = vsel %vm68, %v75, %v76
  %v78 = vrot.slane %v14, 1
  %v79 = vrot.slane %v15, 1
  %v80 = vsel %vm68, %v78, %v79
  %v81 = vrot.slane %v16, 1
  %v82 = vrot.slane %v17, 1
  %v83 = vsel %vm68, %v81, %v82
  %v84 = vrot.slane %v18, 1
  %v85 = vrot.slane %v19, 1
  %v86 = vsel %vm68, %v84, %v85
  %v87 = vrot.slane %v20, 1
  %v88 = vrot.slane %v21, 1
  %v89 = vsel %vm68, %v87, %v88
  %v90 = vrot.slane %v22, 1
  %v91 = vrot.slane %v23, 1
  %v92 = vsel %vm68, %v90, %v91
  %v93 = vrot.slane %v24, 1
  %v94 = vrot.slane %v25, 1
  %v95 = vsel %vm68, %v93, %v94
  %v96 = vrot.slane %v26, 1
  %v97 = vrot.slane %v27, 1
  %v98 = vsel %vm68, %v96, %v97
  %v99 = vrot.slane %v28, 1
  %v100 = vrot.slane %v29, 1
  %v101 = vsel %vm68, %v99, %v100
  %v102 = vrot.slane %v30, 1
  %v103 = vrot.slane %v31, 1
  %v104 = vsel %vm68, %v102, %v103
  %v105 = vrot.slane %v32, 1
  %v106 = vrot.slane %v33, 1
  %v107 = vsel %vm68, %v105, %v106
  %v108 = vrot.slane %v34, 1
  %v109 = vrot.slane %v35, 1
  %v110 = vsel %vm68, %v108, %v109
  %v139 = vmin.f32 %v8, %v71
  %v140 = vmin.f32 %v9, %v70
  %v141 = vmin.f32 %v10, %v74
  %v142 = vmin.f32 %v11, %v73
  %v143 = vmin.f32 %v12, %v77
  %v144 = vmin.f32 %v13, %v76
  %v145 = vmin.f32 %v14, %v80
  %v146 = vmin.f32 %v15, %v79
  %v147 = vmin.f32 %v16, %v83
  %v148 = vmin.f32 %v17, %v82
  %v149 = vmin.f32 %v18, %v86
  %v150 = vmin.f32 %v19, %v85
  %v151 = vmin.f32 %v20, %v89
  %v152 = vmin.f32 %v21, %v88
  %v153 = vmin.f32 %v22, %v92
  %v154 = vmin.f32 %v23, %v91
  %v155 = vmin.f32 %v24, %v95
  %v156 = vmin.f32 %v25, %v94
  %v157 = vmin.f32 %v26, %v98
  %v158 = vmin.f32 %v27, %v97
  %v159 = vmin.f32 %v28, %v101
  %v160 = vmin.f32 %v29, %v100
  %v161 = vmin.f32 %v30, %v104
  %v162 = vmin.f32 %v31, %v103
  %v163 = vmin.f32 %v32, %v107
  %v164 = vmin.f32 %v33, %v106
  %v165 = vmin.f32 %v34, %v110
  %v166 = vmin.f32 %v35, %v109
  %v167 = vmax.f32 %v8, %v71
  %v168 = vmax.f32 %v9, %v70
  %v169 = vmax.f32 %v10, %v74
  %v170 = vmax.f32 %v11, %v73
  %v171 = vmax.f32 %v12, %v77
  %v172 = vmax.f32 %v13, %v76
  %v173 = vmax.f32 %v14, %v80
  %v174 = vmax.f32 %v15, %v79
  %v175 = vmax.f32 %v16, %v83
  %v176 = vmax.f32 %v17, %v82
  %v177 = vmax.f32 %v18, %v86
  %v178 = vmax.f32 %v19, %v85
  %v179 = vmax.f32 %v20, %v89
  %v180 = vmax.f32 %v21, %v88
  %v181 = vmax.f32 %v22, %v92
  %v182 = vmax.f32 %v23, %v91
  %v183 = vmax.f32 %v24, %v95
  %v184 = vmax.f32 %v25, %v94
  %v185 = vmax.f32 %v26, %v98
  %v186 = vmax.f32 %v27, %v97
  %v187 = vmax.f32 %v28, %v101
  %v188 = vmax.f32 %v29, %v100
  %v189 = vmax.f32 %v30, %v104
  %v190 = vmax.f32 %v31, %v103
  %v191 = vmax.f32 %v32, %v107
  %v192 = vmax.f32 %v33, %v106
  %v193 = vmax.f32 %v34, %v110
  %v194 = vmax.f32 %v35, %v109
  %vm197 = vcmask 1041408
  %v198 = vrot.slane %v10, 6
  %v199 = vrot.slane %v11, 6
  %v200 = vsel %vm197, %v198, %v199
  %v201 = vrot.slane %v12, 6
  %v202 = vrot.slane %v13, 6
  %v203 = vsel %vm197, %v201, %v202
  %v204 = vrot.slane %v14, 6
  %v205 = vrot.slane %v15, 6
  %v206 = vsel %vm197, %v204, %v205
  %v207 = vrot.slane %v16, 6
  %v208 = vrot.slane %v17, 6
  %v209 = vsel %vm197, %v207, %v208
  %v210 = vrot.slane %v18, 6
  %v211 = vrot.slane %v19, 6
  %v212 = vsel %vm197, %v210, %v211
  %v213 = vrot.slane %v20, 6
  %v214 = vrot.slane %v21, 6
  %v215 = vsel %vm197, %v213, %v214
  %v216 = vrot.slane %v22, 6
  %v217 = vrot.slane %v23, 6
  %v218 = vsel %vm197, %v216, %v217
  %v219 = vrot.slane %v24, 6
  %v220 = vrot.slane %v25, 6
  %v221 = vsel %vm197, %v219, %v220
  %v222 = vrot.slane %v26, 6
  %v223 = vrot.slane %v27, 6
  %v224 = vsel %vm197, %v222, %v223
  %v225 = vrot.slane %v28, 6
  %v226 = vrot.slane %v29, 6
  %v227 = vsel %vm197, %v225, %v226
  %v228 = vrot.slane %v30, 6
  %v229 = vrot.slane %v31, 6
  %v230 = vsel %vm197, %v228, %v229
  %v231 = vrot.slane %v32, 6
  %v232 = vrot.slane %v33, 6
  %v233 = vsel %vm197, %v231, %v232
  %v234 = vrot.slane %v34, 6
  %v235 = vrot.slane %v35, 6
  %v236 = vsel %vm197, %v234, %v235
  %v237 = vrot.slane %v36, 6
  %v238 = vrot.slane %v37, 6
  %v239 = vsel %vm197, %v237, %v238
  %v268 = vmin.f32 %v8, %v198
  %v269 = vmin.f32 %v9, %v200
  %v270 = vmin.f32 %v10, %v201
  %v271 = vmin.f32 %v11, %v203
  %v272 = vmin.f32 %v12, %v204
  %v273 = vmin.f32 %v13, %v206
  %v274 = vmin.f32 %v14, %v207
  %v275 = vmin.f32 %v15, %v209
  %v276 = vmin.f32 %v16, %v210
  %v277 = vmin.f32 %v17, %v212
  %v278 = vmin.f32 %v18, %v213
  %v279 = vmin.f32 %v19, %v215
  %v280 = vmin.f32 %v20, %v216
  %v281 = vmin.f32 %v21, %v218
  %v282 = vmin.f32 %v22, %v219
  %v283 = vmin.f32 %v23, %v221
  %v284 = vmin.f32 %v24, %v222
  %v285 = vmin.f32 %v25, %v224
  %v286 = vmin.f32 %v26, %v225
  %v287 = vmin.f32 %v27, %v227
  %v288 = vmin.f32 %v28, %v228
  %v289 = vmin.f32 %v29, %v230
  %v290 = vmin.f32 %v30, %v231
  %v291 = vmin.f32 %v31, %v233
  %v292 = vmin.f32 %v32, %v234
  %v293 = vmin.f32 %v33, %v236
  %v294 = vmin.f32 %v34, %v237
  %v295 = vmin.f32 %v35, %v239
  %v296 = vmax.f32 %v8, %v198
  %v297 = vmax.f32 %v9, %v200
  %v298 = vmax.f32 %v10, %v201
  %v299 = vmax.f32 %v11, %v203
  %v300 = vmax.f32 %v12, %v204
  %v301 = vmax.f32 %v13, %v206
  %v302 = vmax.f32 %v14, %v207
  %v303 = vmax.f32 %v15, %v209
  %v304 = vmax.f32 %v16, %v210
  %v305 = vmax.f32 %v17, %v212
  %v306 = vmax.f32 %v18, %v213
  %v307 = vmax.f32 %v19, %v215
  %v308 = vmax.f32 %v20, %v216
  %v309 = vmax.f32 %v21, %v218
  %v310 = vmax.f32 %v22, %v219
  %v311 = vmax.f32 %v23, %v221
  %v312 = vmax.f32 %v24, %v222
  %v313 = vmax.f32 %v25, %v224
  %v314 = vmax.f32 %v26, %v225
  %v315 = vmax.f32 %v27, %v227
  %v316 = vmax.f32 %v28, %v228
  %v317 = vmax.f32 %v29, %v230
  %v318 = vmax.f32 %v30, %v231
  %v319 = vmax.f32 %v31, %v233
  %v320 = vmax.f32 %v32, %v234
  %v321 = vmax.f32 %v33, %v236
  %v322 = vmax.f32 %v34, %v237
  %v323 = vmax.f32 %v35, %v239
  %v324 = vrot.slane %v36, 1
  %v325 = vrot.slane %v37, 1
  %v326 = vsel %vm68, %v324, %v325
  %v329 = vmin.f32 %v36, %v326
  %v330 = vmin.f32 %v37, %v325
  %v331 = vmax.f32 %v36, %v326
  %v332 = vmax.f32 %v37, %v325
  %vm361 = vcmask 1045504
  %v362 = vrot.slane %v268, 2
  %v363 = vrot.slane %v269, 2
  %v364 = vsel %vm361, %v362, %v363
  %v365 = vrot.slane %v270, 2
  %v366 = vrot.slane %v271, 2
  %v367 = vsel %vm361, %v365, %v366
  %v368 = vrot.slane %v272, 2
  %v369 = vrot.slane %v273, 2
  %v370 = vsel %vm361, %v368, %v369
  %v371 = vrot.slane %v274, 2
  %v372 = vrot.slane %v275, 2
  %v373 = vsel %vm361, %v371, %v372
  %v374 = vrot.slane %v276, 2
  %v375 = vrot.slane %v277, 2
  %v376 = vsel %vm361, %v374, %v375
  %v377 = vrot.slane %v278, 2
  %v378 = vrot.slane %v279, 2
  %v379 = vsel %vm361, %v377, %v378
  %v380 = vrot.slane %v280, 2
  %v381 = vrot.slane %v281, 2
  %v382 = vsel %vm361, %v380, %v381
  %v383 = vrot.slane %v282, 2
  %v384 = vrot.slane %v283, 2
  %v385 = vsel %vm361, %v383, %v384
  %v386 = vrot.slane %v284, 2
  %v387 = vrot.slane %v285, 2
  %v388 = vsel %vm361, %v386, %v387
  %v389 = vrot.slane %v286, 2
  %v390 = vrot.slane %v287, 2
  %v391 = vsel %vm361, %v389, %v390
  %v392 = vrot.slane %v288, 2
  %v393 = vrot.slane %v289, 2
  %v394 = vsel %vm361, %v392, %v393
  %v395 = vrot.slane %v290, 2
  %v396 = vrot.slane %v291, 2
  %v397 = vsel %vm361, %v395, %v396
  %v398 = vrot.slane %v292, 2
  %v399 = vrot.slane %v293, 2
  %v400 = vsel %vm361, %v398, %v399
  %v401 = vrot.slane %v294, 2
  %v402 = vrot.slane %v295, 2
  %v403 = vsel %vm361, %v401, %v402
  %v432 = vmin.f32 %v139, %v364
  %v433 = vmin.f32 %v140, %v363
  %v434 = vmin.f32 %v141, %v367
  %v435 = vmin.f32 %v142, %v366
  %v436 = vmin.f32 %v143, %v370
  %v437 = vmin.f32 %v144, %v369
  %v438 = vmin.f32 %v145, %v373
  %v439 = vmin.f32 %v146, %v372
  %v440 = vmin.f32 %v147, %v376
  %v441 = vmin.f32 %v148, %v375
  %v442 = vmin.f32 %v149, %v379
  %v443 = vmin.f32 %v150, %v378
  %v444 = vmin.f32 %v151, %v382
  %v445 = vmin.f32 %v152, %v381
  %v446 = vmin.f32 %v153, %v385
  %v447 = vmin.f32 %v154, %v384
  %v448 = vmin.f32 %v155, %v388
  %v449 = vmin.f32 %v156, %v387
  %v450 = vmin.f32 %v157, %v391
  %v451 = vmin.f32 %v158, %v390
  %v452 = vmin.f32 %v159, %v394
  %v453 = vmin.f32 %v160, %v393
  %v454 = vmin.f32 %v161, %v397
  %v455 = vmin.f32 %v162, %v396
  %v456 = vmin.f32 %v163, %v400
  %v457 = vmin.f32 %v164, %v399
  %v458 = vmin.f32 %v165, %v403
  %v459 = vmin.f32 %v166, %v402
  %v460 = vmax.f32 %v139, %v364
  %v461 = vmax.f32 %v140, %v363
  %v462 = vmax.f32 %v141, %v367
  %v463 = vmax.f32 %v142, %v366
  %v464 = vmax.f32 %v143, %v370
  %v465 = vmax.f32 %v144, %v369
  %v466 = vmax.f32 %v145, %v373
  %v467 = vmax.f32 %v146, %v372
  %v468 = vmax.f32 %v147, %v376
  %v469 = vmax.f32 %v148, %v375
  %v470 = vmax.f32 %v149, %v379
  %v471 = vmax.f32 %v150, %v378
  %v472 = vmax.f32 %v151, %v382
  %v473 = vmax.f32 %v152, %v381
  %v474 = vmax.f32 %v153, %v385
  %v475 = vmax.f32 %v154, %v384
  %v476 = vmax.f32 %v155, %v388
  %v477 = vmax.f32 %v156, %v387
  %v478 = vmax.f32 %v157, %v391
  %v479 = vmax.f32 %v158, %v390
  %v480 = vmax.f32 %v159, %v394
  %v481 = vmax.f32 %v160, %v393
  %v482 = vmax.f32 %v161, %v397
  %v483 = vmax.f32 %v162, %v396
  %v484 = vmax.f32 %v163, %v400
  %v485 = vmax.f32 %v164, %v399
  %v486 = vmax.f32 %v165, %v403
  %v487 = vmax.f32 %v166, %v402
  %v516 = vrot.slane %v141, 1
  %v517 = vrot.slane %v142, 1
  %v518 = vsel %vm68, %v516, %v517
  %v519 = vrot.slane %v143, 1
  %v520 = vrot.slane %v144, 1
  %v521 = vsel %vm68, %v519, %v520
  %v522 = vrot.slane %v145, 1
  %v523 = vrot.slane %v146, 1
  %v524 = vsel %vm68, %v522, %v523
  %v525 = vrot.slane %v147, 1
  %v526 = vrot.slane %v148, 1
  %v527 = vsel %vm68, %v525, %v526
  %v528 = vrot.slane %v149, 1
  %v529 = vrot.slane %v150, 1
  %v530 = vsel %vm68, %v528, %v529
  %v531 = vrot.slane %v151, 1
  %v532 = vrot.slane %v152, 1
  %v533 = vsel %vm68, %v531, %v532
  %v534 = vrot.slane %v153, 1
  %v535 = vrot.slane %v154, 1
  %v536 = vsel %vm68, %v534, %v535
  %v537 = vrot.slane %v155, 1
  %v538 = vrot.slane %v156, 1
  %v539 = vsel %vm68, %v537, %v538
  %v540 = vrot.slane %v157, 1
  %v541 = vrot.slane %v158, 1
  %v542 = vsel %vm68, %v540, %v541
  %v543 = vrot.slane %v159, 1
  %v544 = vrot.slane %v160, 1
  %v545 = vsel %vm68, %v543, %v544
  %v546 = vrot.slane %v161, 1
  %v547 = vrot.slane %v162, 1
  %v548 = vsel %vm68, %v546, %v547
  %v549 = vrot.slane %v163, 1
  %v550 = vrot.slane %v164, 1
  %v551 = vsel %vm68, %v549, %v550
  %v552 = vrot.slane %v165, 1
  %v553 = vrot.slane %v166, 1
  %v554 = vsel %vm68, %v552, %v553
  %v555 = vrot.slane %v329, 1
  %v556 = vrot.slane %v330, 1
  %v557 = vsel %vm68, %v555, %v556
  %v586 = vmax.f32 %v432, %v518
  %v587 = vmax.f32 %v433, %v517
  %v588 = vmax.f32 %v434, %v521
  %v589 = vmax.f32 %v435, %v520
  %v590 = vmax.f32 %v436, %v524
  %v591 = vmax.f32 %v437, %v523
  %v592 = vmax.f32 %v438, %v527
  %v593 = vmax.f32 %v439, %v526
  %v594 = vmax.f32 %v440, %v530
  %v595 = vmax.f32 %v441, %v529
  %v596 = vmax.f32 %v442, %v533
  %v597 = vmax.f32 %v443, %v532
  %v598 = vmax.f32 %v444, %v536
  %v599 = vmax.f32 %v445, %v535
  %v600 = vmax.f32 %v446, %v539
  %v601 = vmax.f32 %v447, %v538
  %v602 = vmax.f32 %v448, %v542
  %v603 = vmax.f32 %v449, %v541
  %v604 = vmax.f32 %v450, %v545
  %v605 = vmax.f32 %v451, %v544
  %v606 = vmax.f32 %v452, %v548
  %v607 = vmax.f32 %v453, %v547
  %v608 = vmax.f32 %v454, %v551
  %v609 = vmax.f32 %v455, %v550
  %v610 = vmax.f32 %v456, %v554
  %v611 = vmax.f32 %v457, %v553
  %v612 = vmax.f32 %v458, %v557
  %v613 = vmax.f32 %v459, %v556
  %v642 = vrot.slane %v169, 1
  %v643 = vrot.slane %v170, 1
  %v644 = vsel %vm68, %v642, %v643
  %v645 = vrot.slane %v171, 1
  %v646 = vrot.slane %v172, 1
  %v647 = vsel %vm68, %v645, %v646
  %v648 = vrot.slane %v173, 1
  %v649 = vrot.slane %v174, 1
  %v650 = vsel %vm68, %v648, %v649
  %v651 = vrot.slane %v175, 1
  %v652 = vrot.slane %v176, 1
  %v653 = vsel %vm68, %v651, %v652
  %v654 = vrot.slane %v177, 1
  %v655 = vrot.slane %v178, 1
  %v656 = vsel %vm68, %v654, %v655
  %v657 = vrot.slane %v179, 1
  %v658 = vrot.slane %v180, 1
  %v659 = vsel %vm68, %v657, %v658
  %v660 = vrot.slane %v181, 1
  %v661 = vrot.slane %v182, 1
  %v662 = vsel %vm68, %v660, %v661
  %v663 = vrot.slane %v183, 1
  %v664 = vrot.slane %v184, 1
  %v665 = vsel %vm68, %v663, %v664
  %v666 = vrot.slane %v185, 1
  %v667 = vrot.slane %v186, 1
  %v668 = vsel %vm68, %v666, %v667
  %v669 = vrot.slane %v187, 1
  %v670 = vrot.slane %v188, 1
  %v671 = vsel %vm68, %v669, %v670
  %v672 = vrot.slane %v189, 1
  %v673 = vrot.slane %v190, 1
  %v674 = vsel %vm68, %v672, %v673
  %v675 = vrot.slane %v191, 1
  %v676 = vrot.slane %v192, 1
  %v677 = vsel %vm68, %v675, %v676
  %v678 = vrot.slane %v193, 1
  %v679 = vrot.slane %v194, 1
  %v680 = vsel %vm68, %v678, %v679
  %v681 = vrot.slane %v331, 1
  %v682 = vrot.slane %v332, 1
  %v683 = vsel %vm68, %v681, %v682
  %v712 = vmin.f32 %v167, %v644
  %v713 = vmin.f32 %v168, %v643
  %v714 = vmin.f32 %v169, %v647
  %v715 = vmin.f32 %v170, %v646
  %v716 = vmin.f32 %v171, %v650
  %v717 = vmin.f32 %v172, %v649
  %v718 = vmin.f32 %v173, %v653
  %v719 = vmin.f32 %v174, %v652
  %v720 = vmin.f32 %v175, %v656
  %v721 = vmin.f32 %v176, %v655
  %v722 = vmin.f32 %v177, %v659
  %v723 = vmin.f32 %v178, %v658
  %v724 = vmin.f32 %v179, %v662
  %v725 = vmin.f32 %v180, %v661
  %v726 = vmin.f32 %v181, %v665
  %v727 = vmin.f32 %v182, %v664
  %v728 = vmin.f32 %v183, %v668
  %v729 = vmin.f32 %v184, %v667
  %v730 = vmin.f32 %v185, %v671
  %v731 = vmin.f32 %v186, %v670
  %v732 = vmin.f32 %v187, %v674
  %v733 = vmin.f32 %v188, %v673
  %v734 = vmin.f32 %v189, %v677
  %v735 = vmin.f32 %v190, %v676
  %v736 = vmin.f32 %v191, %v680
  %v737 = vmin.f32 %v192, %v679
  %v738 = vmin.f32 %v193, %v683
  %v739 = vmin.f32 %v194, %v682
  %v740 = vmax.f32 %v167, %v644
  %v741 = vmax.f32 %v168, %v643
  %v742 = vmax.f32 %v169, %v647
  %v743 = vmax.f32 %v170, %v646
  %v744 = vmax.f32 %v171, %v650
  %v745 = vmax.f32 %v172, %v649
  %v746 = vmax.f32 %v173, %v653
  %v747 = vmax.f32 %v174, %v652
  %v748 = vmax.f32 %v175, %v656
  %v749 = vmax.f32 %v176, %v655
  %v750 = vmax.f32 %v177, %v659
  %v751 = vmax.f32 %v178, %v658
  %v752 = vmax.f32 %v179, %v662
  %v753 = vmax.f32 %v180, %v661
  %v754 = vmax.f32 %v181, %v665
  %v755 = vmax.f32 %v182, %v664
  %v756 = vmax.f32 %v183, %v668
  %v757 = vmax.f32 %v184, %v667
  %v758 = vmax.f32 %v185, %v671
  %v759 = vmax.f32 %v186, %v670
  %v760 = vmax.f32 %v187, %v674
  %v761 = vmax.f32 %v188, %v673
  %v762 = vmax.f32 %v189, %v677
  %v763 = vmax.f32 %v190, %v676
  %v764 = vmax.f32 %v191, %v680
  %v765 = vmax.f32 %v192, %v679
  %v766 = vmax.f32 %v193, %v683
  %v767 = vmax.f32 %v194, %v682
  %v796 = vrot.slane %v740, 6
  %v797 = vrot.slane %v741, 6
  %v798 = vsel %vm197, %v796, %v797
  %v799 = vrot.slane %v742, 6
  %v800 = vrot.slane %v743, 6
  %v801 = vsel %vm197, %v799, %v800
  %v802 = vrot.slane %v744, 6
  %v803 = vrot.slane %v745, 6
  %v804 = vsel %vm197, %v802, %v803
  %v805 = vrot.slane %v746, 6
  %v806 = vrot.slane %v747, 6
  %v807 = vsel %vm197, %v805, %v806
  %v808 = vrot.slane %v748, 6
  %v809 = vrot.slane %v749, 6
  %v810 = vsel %vm197, %v808, %v809
  %v811 = vrot.slane %v750, 6
  %v812 = vrot.slane %v751, 6
  %v813 = vsel %vm197, %v811, %v812
  %v814 = vrot.slane %v752, 6
  %v815 = vrot.slane %v753, 6
  %v816 = vsel %vm197, %v814, %v815
  %v817 = vrot.slane %v754, 6
  %v818 = vrot.slane %v755, 6
  %v819 = vsel %vm197, %v817, %v818
  %v820 = vrot.slane %v756, 6
  %v821 = vrot.slane %v757, 6
  %v822 = vsel %vm197, %v820, %v821
  %v823 = vrot.slane %v758, 6
  %v824 = vrot.slane %v759, 6
  %v825 = vsel %vm197, %v823, %v824
  %v826 = vrot.slane %v760, 6
  %v827 = vrot.slane %v761, 6
  %v828 = vsel %vm197, %v826, %v827
  %v829 = vrot.slane %v762, 6
  %v830 = vrot.slane %v763, 6
  %v831 = vsel %vm197, %v829, %v830
  %v832 = vrot.slane %v764, 6
  %v833 = vrot.slane %v765, 6
  %v834 = vsel %vm197, %v832, %v833
  %v835 = vrot.slane %v766, 6
  %v836 = vrot.slane %v767, 6
  %v837 = vsel %vm197, %v835, %v836
  %v866 = vmin.f32 %v296, %v796
  %v867 = vmin.f32 %v297, %v798
  %v868 = vmin.f32 %v298, %v799
  %v869 = vmin.f32 %v299, %v801
  %v870 = vmin.f32 %v300, %v802
  %v871 = vmin.f32 %v301, %v804
  %v872 = vmin.f32 %v302, %v805
  %v873 = vmin.f32 %v303, %v807
  %v874 = vmin.f32 %v304, %v808
  %v875 = vmin.f32 %v305, %v810
  %v876 = vmin.f32 %v306, %v811
  %v877 = vmin.f32 %v307, %v813
  %v878 = vmin.f32 %v308, %v814
  %v879 = vmin.f32 %v309, %v816
  %v880 = vmin.f32 %v310, %v817
  %v881 = vmin.f32 %v311, %v819
  %v882 = vmin.f32 %v312, %v820
  %v883 = vmin.f32 %v313, %v822
  %v884 = vmin.f32 %v314, %v823
  %v885 = vmin.f32 %v315, %v825
  %v886 = vmin.f32 %v316, %v826
  %v887 = vmin.f32 %v317, %v828
  %v888 = vmin.f32 %v318, %v829
  %v889 = vmin.f32 %v319, %v831
  %v890 = vmin.f32 %v320, %v832
  %v891 = vmin.f32 %v321, %v834
  %v892 = vmin.f32 %v322, %v835
  %v893 = vmin.f32 %v323, %v837
  %v894 = vmin.f32 %v712, %v460
  %v895 = vmin.f32 %v713, %v461
  %v896 = vmin.f32 %v714, %v462
  %v897 = vmin.f32 %v715, %v463
  %v898 = vmin.f32 %v716, %v464
  %v899 = vmin.f32 %v717, %v465
  %v900 = vmin.f32 %v718, %v466
  %v901 = vmin.f32 %v719, %v467
  %v902 = vmin.f32 %v720, %v468
  %v903 = vmin.f32 %v721, %v469
  %v904 = vmin.f32 %v722, %v470
  %v905 = vmin.f32 %v723, %v471
  %v906 = vmin.f32 %v724, %v472
  %v907 = vmin.f32 %v725, %v473
  %v908 = vmin.f32 %v726, %v474
  %v909 = vmin.f32 %v727, %v475
  %v910 = vmin.f32 %v728, %v476
  %v911 = vmin.f32 %v729, %v477
  %v912 = vmin.f32 %v730, %v478
  %v913 = vmin.f32 %v731, %v479
  %v914 = vmin.f32 %v732, %v480
  %v915 = vmin.f32 %v733, %v481
  %v916 = vmin.f32 %v734, %v482
  %v917 = vmin.f32 %v735, %v483
  %v918 = vmin.f32 %v736, %v484
  %v919 = vmin.f32 %v737, %v485
  %v920 = vmin.f32 %v738, %v486
  %v921 = vmin.f32 %v739, %v487
  %v922 = vmax.f32 %v712, %v460
  %v923 = vmax.f32 %v713, %v461
  %v924 = vmax.f32 %v714, %v462
  %v925 = vmax.f32 %v715, %v463
  %v926 = vmax.f32 %v716, %v464
  %v927 = vmax.f32 %v717, %v465
  %v928 = vmax.f32 %v718, %v466
  %v929 = vmax.f32 %v719, %v467
  %v930 = vmax.f32 %v720, %v468
  %v931 = vmax.f32 %v721, %v469
  %v932 = vmax.f32 %v722, %v470
  %v933 = vmax.f32 %v723, %v471
  %v934 = vmax.f32 %v724, %v472
  %v935 = vmax.f32 %v725, %v473
  %v936 = vmax.f32 %v726, %v474
  %v937 = vmax.f32 %v727, %v475
  %v938 = vmax.f32 %v728, %v476
  %v939 = vmax.f32 %v729, %v477
  %v940 = vmax.f32 %v730, %v478
  %v941 = vmax.f32 %v731, %v479
  %v942 = vmax.f32 %v732, %v480
  %v943 = vmax.f32 %v733, %v481
  %v944 = vmax.f32 %v734, %v482
  %v945 = vmax.f32 %v735, %v483
  %v946 = vmax.f32 %v736, %v484
  %v947 = vmax.f32 %v737, %v485
  %v948 = vmax.f32 %v738, %v486
  %v949 = vmax.f32 %v739, %v487
  %v978 = vrot.slane %v586, 6
  %v979 = vrot.slane %v587, 6
  %v980 = vsel %vm197, %v978, %v979
  %v981 = vrot.slane %v588, 6
  %v982 = vrot.slane %v589, 6
  %v983 = vsel %vm197, %v981, %v982
  %v984 = vrot.slane %v590, 6
  %v985 = vrot.slane %v591, 6
  %v986 = vsel %vm197, %v984, %v985
  %v987 = vrot.slane %v592, 6
  %v988 = vrot.slane %v593, 6
  %v989 = vsel %vm197, %v987, %v988
  %v990 = vrot.slane %v594, 6
  %v991 = vrot.slane %v595, 6
  %v992 = vsel %vm197, %v990, %v991
  %v993 = vrot.slane %v596, 6
  %v994 = vrot.slane %v597, 6
  %v995 = vsel %vm197, %v993, %v994
  %v996 = vrot.slane %v598, 6
  %v997 = vrot.slane %v599, 6
  %v998 = vsel %vm197, %v996, %v997
  %v999 = vrot.slane %v600, 6
  %v1000 = vrot.slane %v601, 6
  %v1001 = vsel %vm197, %v999, %v1000
  %v1002 = vrot.slane %v602, 6
  %v1003 = vrot.slane %v603, 6
  %v1004 = vsel %vm197, %v1002, %v1003
  %v1005 = vrot.slane %v604, 6
  %v1006 = vrot.slane %v605, 6
  %v1007 = vsel %vm197, %v1005, %v1006
  %v1008 = vrot.slane %v606, 6
  %v1009 = vrot.slane %v607, 6
  %v1010 = vsel %vm197, %v1008, %v1009
  %v1011 = vrot.slane %v608, 6
  %v1012 = vrot.slane %v609, 6
  %v1013 = vsel %vm197, %v1011, %v1012
  %v1014 = vrot.slane %v610, 6
  %v1015 = vrot.slane %v611, 6
  %v1016 = vsel %vm197, %v1014, %v1015
  %v1017 = vrot.slane %v612, 6
  %v1018 = vrot.slane %v613, 6
  %v1019 = vsel %vm197, %v1017, %v1018
  %v1048 = vmin.f32 %v866, %v978
  %v1049 = vmin.f32 %v867, %v980
  %v1050 = vmin.f32 %v868, %v981
  %v1051 = vmin.f32 %v869, %v983
  %v1052 = vmin.f32 %v870, %v984
  %v1053 = vmin.f32 %v871, %v986
  %v1054 = vmin.f32 %v872, %v987
  %v1055 = vmin.f32 %v873, %v989
  %v1056 = vmin.f32 %v874, %v990
  %v1057 = vmin.f32 %v875, %v992
  %v1058 = vmin.f32 %v876, %v993
  %v1059 = vmin.f32 %v877, %v995
  %v1060 = vmin.f32 %v878, %v996
  %v1061 = vmin.f32 %v879, %v998
  %v1062 = vmin.f32 %v880, %v999
  %v1063 = vmin.f32 %v881, %v1001
  %v1064 = vmin.f32 %v882, %v1002
  %v1065 = vmin.f32 %v883, %v1004
  %v1066 = vmin.f32 %v884, %v1005
  %v1067 = vmin.f32 %v885, %v1007
  %v1068 = vmin.f32 %v886, %v1008
  %v1069 = vmin.f32 %v887, %v1010
  %v1070 = vmin.f32 %v888, %v1011
  %v1071 = vmin.f32 %v889, %v1013
  %v1072 = vmin.f32 %v890, %v1014
  %v1073 = vmin.f32 %v891, %v1016
  %v1074 = vmin.f32 %v892, %v1017
  %v1075 = vmin.f32 %v893, %v1019
  %v1076 = vmax.f32 %v866, %v978
  %v1077 = vmax.f32 %v867, %v980
  %v1078 = vmax.f32 %v868, %v981
  %v1079 = vmax.f32 %v869, %v983
  %v1080 = vmax.f32 %v870, %v984
  %v1081 = vmax.f32 %v871, %v986
  %v1082 = vmax.f32 %v872, %v987
  %v1083 = vmax.f32 %v873, %v989
  %v1084 = vmax.f32 %v874, %v990
  %v1085 = vmax.f32 %v875, %v992
  %v1086 = vmax.f32 %v876, %v993
  %v1087 = vmax.f32 %v877, %v995
  %v1088 = vmax.f32 %v878, %v996
  %v1089 = vmax.f32 %v879, %v998
  %v1090 = vmax.f32 %v880, %v999
  %v1091 = vmax.f32 %v881, %v1001
  %v1092 = vmax.f32 %v882, %v1002
  %v1093 = vmax.f32 %v883, %v1004
  %v1094 = vmax.f32 %v884, %v1005
  %v1095 = vmax.f32 %v885, %v1007
  %v1096 = vmax.f32 %v886, %v1008
  %v1097 = vmax.f32 %v887, %v1010
  %v1098 = vmax.f32 %v888, %v1011
  %v1099 = vmax.f32 %v889, %v1013
  %v1100 = vmax.f32 %v890, %v1014
  %v1101 = vmax.f32 %v891, %v1016
  %v1102 = vmax.f32 %v892, %v1017
  %v1103 = vmax.f32 %v893, %v1019
  %v1132 = vrot.slane %v1048, 2
  %v1133 = vrot.slane %v1049, 2
  %v1134 = vsel %vm361, %v1132, %v1133
  %v1135 = vrot.slane %v1050, 2
  %v1136 = vrot.slane %v1051, 2
  %v1137 = vsel %vm361, %v1135, %v1136
  %v1138 = vrot.slane %v1052, 2
  %v1139 = vrot.slane %v1053, 2
  %v1140 = vsel %vm361, %v1138, %v1139
  %v1141 = vrot.slane %v1054, 2
  %v1142 = vrot.slane %v1055, 2
  %v1143 = vsel %vm361, %v1141, %v1142
  %v1144 = vrot.slane %v1056, 2
  %v1145 = vrot.slane %v1057, 2
  %v1146 = vsel %vm361, %v1144, %v1145
  %v1147 = vrot.slane %v1058, 2
  %v1148 = vrot.slane %v1059, 2
  %v1149 = vsel %vm361, %v1147, %v1148
  %v1150 = vrot.slane %v1060, 2
  %v1151 = vrot.slane %v1061, 2
  %v1152 = vsel %vm361, %v1150, %v1151
  %v1153 = vrot.slane %v1062, 2
  %v1154 = vrot.slane %v1063, 2
  %v1155 = vsel %vm361, %v1153, %v1154
  %v1156 = vrot.slane %v1064, 2
  %v1157 = vrot.slane %v1065, 2
  %v1158 = vsel %vm361, %v1156, %v1157
  %v1159 = vrot.slane %v1066, 2
  %v1160 = vrot.slane %v1067, 2
  %v1161 = vsel %vm361, %v1159, %v1160
  %v1162 = vrot.slane %v1068, 2
  %v1163 = vrot.slane %v1069, 2
  %v1164 = vsel %vm361, %v1162, %v1163
  %v1165 = vrot.slane %v1070, 2
  %v1166 = vrot.slane %v1071, 2
  %v1167 = vsel %vm361, %v1165, %v1166
  %v1168 = vrot.slane %v1072, 2
  %v1169 = vrot.slane %v1073, 2
  %v1170 = vsel %vm361, %v1168, %v1169
  %v1171 = vrot.slane %v1074, 2
  %v1172 = vrot.slane %v1075, 2
  %v1173 = vsel %vm361, %v1171, %v1172
  %v1202 = vmin.f32 %v894, %v1134
  %v1203 = vmin.f32 %v895, %v1133
  %v1204 = vmin.f32 %v896, %v1137
  %v1205 = vmin.f32 %v897, %v1136
  %v1206 = vmin.f32 %v898, %v1140
  %v1207 = vmin.f32 %v899, %v1139
  %v1208 = vmin.f32 %v900, %v1143
  %v1209 = vmin.f32 %v901, %v1142
  %v1210 = vmin.f32 %v902, %v1146
  %v1211 = vmin.f32 %v903, %v1145
  %v1212 = vmin.f32 %v904, %v1149
  %v1213 = vmin.f32 %v905, %v1148
  %v1214 = vmin.f32 %v906, %v1152
  %v1215 = vmin.f32 %v907, %v1151
  %v1216 = vmin.f32 %v908, %v1155
  %v1217 = vmin.f32 %v909, %v1154
  %v1218 = vmin.f32 %v910, %v1158
  %v1219 = vmin.f32 %v911, %v1157
  %v1220 = vmin.f32 %v912, %v1161
  %v1221 = vmin.f32 %v913, %v1160
  %v1222 = vmin.f32 %v914, %v1164
  %v1223 = vmin.f32 %v915, %v1163
  %v1224 = vmin.f32 %v916, %v1167
  %v1225 = vmin.f32 %v917, %v1166
  %v1226 = vmin.f32 %v918, %v1170
  %v1227 = vmin.f32 %v919, %v1169
  %v1228 = vmin.f32 %v920, %v1173
  %v1229 = vmin.f32 %v921, %v1172
  %v1230 = vmax.f32 %v894, %v1134
  %v1231 = vmax.f32 %v895, %v1133
  %v1232 = vmax.f32 %v896, %v1137
  %v1233 = vmax.f32 %v897, %v1136
  %v1234 = vmax.f32 %v898, %v1140
  %v1235 = vmax.f32 %v899, %v1139
  %v1236 = vmax.f32 %v900, %v1143
  %v1237 = vmax.f32 %v901, %v1142
  %v1238 = vmax.f32 %v902, %v1146
  %v1239 = vmax.f32 %v903, %v1145
  %v1240 = vmax.f32 %v904, %v1149
  %v1241 = vmax.f32 %v905, %v1148
  %v1242 = vmax.f32 %v906, %v1152
  %v1243 = vmax.f32 %v907, %v1151
  %v1244 = vmax.f32 %v908, %v1155
  %v1245 = vmax.f32 %v909, %v1154
  %v1246 = vmax.f32 %v910, %v1158
  %v1247 = vmax.f32 %v911, %v1157
  %v1248 = vmax.f32 %v912, %v1161
  %v1249 = vmax.f32 %v913, %v1160
  %v1250 = vmax.f32 %v914, %v1164
  %v1251 = vmax.f32 %v915, %v1163
  %v1252 = vmax.f32 %v916, %v1167
  %v1253 = vmax.f32 %v917, %v1166
  %v1254 = vmax.f32 %v918, %v1170
  %v1255 = vmax.f32 %v919, %v1169
  %v1256 = vmax.f32 %v920, %v1173
  %v1257 = vmax.f32 %v921, %v1172
  %v1258 = vmax.f32 %v1202, %v12
  %v1259 = vmax.f32 %v1203, %v13
  %v1260 = vmax.f32 %v1204, %v14
  %v1261 = vmax.f32 %v1205, %v15
  %v1262 = vmax.f32 %v1206, %v16
  %v1263 = vmax.f32 %v1207, %v17
  %v1264 = vmax.f32 %v1208, %v18
  %v1265 = vmax.f32 %v1209, %v19
  %v1266 = vmax.f32 %v1210, %v20
  %v1267 = vmax.f32 %v1211, %v21
  %v1268 = vmax.f32 %v1212, %v22
  %v1269 = vmax.f32 %v1213, %v23
  %v1270 = vmax.f32 %v1214, %v24
  %v1271 = vmax.f32 %v1215, %v25
  %v1272 = vmax.f32 %v1216, %v26
  %v1273 = vmax.f32 %v1217, %v27
  %v1274 = vmax.f32 %v1218, %v28
  %v1275 = vmax.f32 %v1219, %v29
  %v1276 = vmax.f32 %v1220, %v30
  %v1277 = vmax.f32 %v1221, %v31
  %v1278 = vmax.f32 %v1222, %v32
  %v1279 = vmax.f32 %v1223, %v33
  %v1280 = vmax.f32 %v1224, %v34
  %v1281 = vmax.f32 %v1225, %v35
  %v1282 = vmax.f32 %v1226, %v36
  %v1283 = vmax.f32 %v1227, %v37
  %v1284 = vmax.f32 %v1228, %v38
  %v1285 = vmax.f32 %v1229, %v39
  %v1286 = vmin.f32 %v922, %v1258
  %v1287 = vmin.f32 %v923, %v1259
  %v1288 = vmin.f32 %v924, %v1260
  %v1289 = vmin.f32 %v925, %v1261
  %v1290 = vmin.f32 %v926, %v1262
  %v1291 = vmin.f32 %v927, %v1263
  %v1292 = vmin.f32 %v928, %v1264
  %v1293 = vmin.f32 %v929, %v1265
  %v1294 = vmin.f32 %v930, %v1266
  %v1295 = vmin.f32 %v931, %v1267
  %v1296 = vmin.f32 %v932, %v1268
  %v1297 = vmin.f32 %v933, %v1269
  %v1298 = vmin.f32 %v934, %v1270
  %v1299 = vmin.f32 %v935, %v1271
  %v1300 = vmin.f32 %v936, %v1272
  %v1301 = vmin.f32 %v937, %v1273
  %v1302 = vmin.f32 %v938, %v1274
  %v1303 = vmin.f32 %v939, %v1275
  %v1304 = vmin.f32 %v940, %v1276
  %v1305 = vmin.f32 %v941, %v1277
  %v1306 = vmin.f32 %v942, %v1278
  %v1307 = vmin.f32 %v943, %v1279
  %v1308 = vmin.f32 %v944, %v1280
  %v1309 = vmin.f32 %v945, %v1281
  %v1310 = vmin.f32 %v946, %v1282
  %v1311 = vmin.f32 %v947, %v1283
  %v1312 = vmin.f32 %v948, %v1284
  %v1313 = vmin.f32 %v949, %v1285
  %v1314 = vmax.f32 %v922, %v1258
  %v1315 = vmax.f32 %v923, %v1259
  %v1316 = vmax.f32 %v924, %v1260
  %v1317 = vmax.f32 %v925, %v1261
  %v1318 = vmax.f32 %v926, %v1262
  %v1319 = vmax.f32 %v927, %v1263
  %v1320 = vmax.f32 %v928, %v1264
  %v1321 = vmax.f32 %v929, %v1265
  %v1322 = vmax.f32 %v930, %v1266
  %v1323 = vmax.f32 %v931, %v1267
  %v1324 = vmax.f32 %v932, %v1268
  %v1325 = vmax.f32 %v933, %v1269
  %v1326 = vmax.f32 %v934, %v1270
  %v1327 = vmax.f32 %v935, %v1271
  %v1328 = vmax.f32 %v936, %v1272
  %v1329 = vmax.f32 %v937, %v1273
  %v1330 = vmax.f32 %v938, %v1274
  %v1331 = vmax.f32 %v939, %v1275
  %v1332 = vmax.f32 %v940, %v1276
  %v1333 = vmax.f32 %v941, %v1277
  %v1334 = vmax.f32 %v942, %v1278
  %v1335 = vmax.f32 %v943, %v1279
  %v1336 = vmax.f32 %v944, %v1280
  %v1337 = vmax.f32 %v945, %v1281
  %v1338 = vmax.f32 %v946, %v1282
  %v1339 = vmax.f32 %v947, %v1283
  %v1340 = vmax.f32 %v948, %v1284
  %v1341 = vmax.f32 %v949, %v1285
  %v1370 = vrot.slane %v1314, 6
  %v1371 = vrot.slane %v1315, 6
  %v1372 = vsel %vm197, %v1370, %v1371
  %v1373 = vrot.slane %v1316, 6
  %v1374 = vrot.slane %v1317, 6
  %v1375 = vsel %vm197, %v1373, %v1374
  %v1376 = vrot.slane %v1318, 6
  %v1377 = vrot.slane %v1319, 6
  %v1378 = vsel %vm197, %v1376, %v1377
  %v1379 = vrot.slane %v1320, 6
  %v1380 = vrot.slane %v1321, 6
  %v1381 = vsel %vm197, %v1379, %v1380
  %v1382 = vrot.slane %v1322, 6
  %v1383 = vrot.slane %v1323, 6
  %v1384 = vsel %vm197, %v1382, %v1383
  %v1385 = vrot.slane %v1324, 6
  %v1386 = vrot.slane %v1325, 6
  %v1387 = vsel %vm197, %v1385, %v1386
  %v1388 = vrot.slane %v1326, 6
  %v1389 = vrot.slane %v1327, 6
  %v1390 = vsel %vm197, %v1388, %v1389
  %v1391 = vrot.slane %v1328, 6
  %v1392 = vrot.slane %v1329, 6
  %v1393 = vsel %vm197, %v1391, %v1392
  %v1394 = vrot.slane %v1330, 6
  %v1395 = vrot.slane %v1331, 6
  %v1396 = vsel %vm197, %v1394, %v1395
  %v1397 = vrot.slane %v1332, 6
  %v1398 = vrot.slane %v1333, 6
  %v1399 = vsel %vm197, %v1397, %v1398
  %v1400 = vrot.slane %v1334, 6
  %v1401 = vrot.slane %v1335, 6
  %v1402 = vsel %vm197, %v1400, %v1401
  %v1403 = vrot.slane %v1336, 6
  %v1404 = vrot.slane %v1337, 6
  %v1405 = vsel %vm197, %v1403, %v1404
  %v1406 = vrot.slane %v1338, 6
  %v1407 = vrot.slane %v1339, 6
  %v1408 = vsel %vm197, %v1406, %v1407
  %v1409 = vrot.slane %v1340, 6
  %v1410 = vrot.slane %v1341, 6
  %v1411 = vsel %vm197, %v1409, %v1410
  %v1440 = vmin.f32 %v1076, %v1370
  %v1441 = vmin.f32 %v1077, %v1372
  %v1442 = vmin.f32 %v1078, %v1373
  %v1443 = vmin.f32 %v1079, %v1375
  %v1444 = vmin.f32 %v1080, %v1376
  %v1445 = vmin.f32 %v1081, %v1378
  %v1446 = vmin.f32 %v1082, %v1379
  %v1447 = vmin.f32 %v1083, %v1381
  %v1448 = vmin.f32 %v1084, %v1382
  %v1449 = vmin.f32 %v1085, %v1384
  %v1450 = vmin.f32 %v1086, %v1385
  %v1451 = vmin.f32 %v1087, %v1387
  %v1452 = vmin.f32 %v1088, %v1388
  %v1453 = vmin.f32 %v1089, %v1390
  %v1454 = vmin.f32 %v1090, %v1391
  %v1455 = vmin.f32 %v1091, %v1393
  %v1456 = vmin.f32 %v1092, %v1394
  %v1457 = vmin.f32 %v1093, %v1396
  %v1458 = vmin.f32 %v1094, %v1397
  %v1459 = vmin.f32 %v1095, %v1399
  %v1460 = vmin.f32 %v1096, %v1400
  %v1461 = vmin.f32 %v1097, %v1402
  %v1462 = vmin.f32 %v1098, %v1403
  %v1463 = vmin.f32 %v1099, %v1405
  %v1464 = vmin.f32 %v1100, %v1406
  %v1465 = vmin.f32 %v1101, %v1408
  %v1466 = vmin.f32 %v1102, %v1409
  %v1467 = vmin.f32 %v1103, %v1411
  %v1468 = vmin.f32 %v1286, %v1230
  %v1469 = vmin.f32 %v1287, %v1231
  %v1470 = vmin.f32 %v1288, %v1232
  %v1471 = vmin.f32 %v1289, %v1233
  %v1472 = vmin.f32 %v1290, %v1234
  %v1473 = vmin.f32 %v1291, %v1235
  %v1474 = vmin.f32 %v1292, %v1236
  %v1475 = vmin.f32 %v1293, %v1237
  %v1476 = vmin.f32 %v1294, %v1238
  %v1477 = vmin.f32 %v1295, %v1239
  %v1478 = vmin.f32 %v1296, %v1240
  %v1479 = vmin.f32 %v1297, %v1241
  %v1480 = vmin.f32 %v1298, %v1242
  %v1481 = vmin.f32 %v1299, %v1243
  %v1482 = vmin.f32 %v1300, %v1244
  %v1483 = vmin.f32 %v1301, %v1245
  %v1484 = vmin.f32 %v1302, %v1246
  %v1485 = vmin.f32 %v1303, %v1247
  %v1486 = vmin.f32 %v1304, %v1248
  %v1487 = vmin.f32 %v1305, %v1249
  %v1488 = vmin.f32 %v1306, %v1250
  %v1489 = vmin.f32 %v1307, %v1251
  %v1490 = vmin.f32 %v1308, %v1252
  %v1491 = vmin.f32 %v1309, %v1253
  %v1492 = vmin.f32 %v1310, %v1254
  %v1493 = vmin.f32 %v1311, %v1255
  %v1494 = vmin.f32 %v1312, %v1256
  %v1495 = vmin.f32 %v1313, %v1257
  %v1496 = vmax.f32 %v1286, %v1230
  %v1497 = vmax.f32 %v1287, %v1231
  %v1498 = vmax.f32 %v1288, %v1232
  %v1499 = vmax.f32 %v1289, %v1233
  %v1500 = vmax.f32 %v1290, %v1234
  %v1501 = vmax.f32 %v1291, %v1235
  %v1502 = vmax.f32 %v1292, %v1236
  %v1503 = vmax.f32 %v1293, %v1237
  %v1504 = vmax.f32 %v1294, %v1238
  %v1505 = vmax.f32 %v1295, %v1239
  %v1506 = vmax.f32 %v1296, %v1240
  %v1507 = vmax.f32 %v1297, %v1241
  %v1508 = vmax.f32 %v1298, %v1242
  %v1509 = vmax.f32 %v1299, %v1243
  %v1510 = vmax.f32 %v1300, %v1244
  %v1511 = vmax.f32 %v1301, %v1245
  %v1512 = vmax.f32 %v1302, %v1246
  %v1513 = vmax.f32 %v1303, %v1247
  %v1514 = vmax.f32 %v1304, %v1248
  %v1515 = vmax.f32 %v1305, %v1249
  %v1516 = vmax.f32 %v1306, %v1250
  %v1517 = vmax.f32 %v1307, %v1251
  %v1518 = vmax.f32 %v1308, %v1252
  %v1519 = vmax.f32 %v1309, %v1253
  %v1520 = vmax.f32 %v1310, %v1254
  %v1521 = vmax.f32 %v1311, %v1255
  %v1522 = vmax.f32 %v1312, %v1256
  %v1523 = vmax.f32 %v1313, %v1257
  %vm1526 = vcmask 1040384
  %v1527 = vrot.slane %v12, 7
  %v1528 = vrot.slane %v13, 7
  %v1529 = vsel %vm1526, %v1527, %v1528
  %v1530 = vrot.slane %v14, 7
  %v1531 = vrot.slane %v15, 7
  %v1532 = vsel %vm1526, %v1530, %v1531
  %v1533 = vrot.slane %v16, 7
  %v1534 = vrot.slane %v17, 7
  %v1535 = vsel %vm1526, %v1533, %v1534
  %v1536 = vrot.slane %v18, 7
  %v1537 = vrot.slane %v19, 7
  %v1538 = vsel %vm1526, %v1536, %v1537
  %v1539 = vrot.slane %v20, 7
  %v1540 = vrot.slane %v21, 7
  %v1541 = vsel %vm1526, %v1539, %v1540
  %v1542 = vrot.slane %v22, 7
  %v1543 = vrot.slane %v23, 7
  %v1544 = vsel %vm1526, %v1542, %v1543
  %v1545 = vrot.slane %v24, 7
  %v1546 = vrot.slane %v25, 7
  %v1547 = vsel %vm1526, %v1545, %v1546
  %v1548 = vrot.slane %v26, 7
  %v1549 = vrot.slane %v27, 7
  %v1550 = vsel %vm1526, %v1548, %v1549
  %v1551 = vrot.slane %v28, 7
  %v1552 = vrot.slane %v29, 7
  %v1553 = vsel %vm1526, %v1551, %v1552
  %v1554 = vrot.slane %v30, 7
  %v1555 = vrot.slane %v31, 7
  %v1556 = vsel %vm1526, %v1554, %v1555
  %v1557 = vrot.slane %v32, 7
  %v1558 = vrot.slane %v33, 7
  %v1559 = vsel %vm1526, %v1557, %v1558
  %v1560 = vrot.slane %v34, 7
  %v1561 = vrot.slane %v35, 7
  %v1562 = vsel %vm1526, %v1560, %v1561
  %v1563 = vrot.slane %v36, 7
  %v1564 = vrot.slane %v37, 7
  %v1565 = vsel %vm1526, %v1563, %v1564
  %v1566 = vrot.slane %v38, 7
  %v1567 = vrot.slane %v39, 7
  %v1568 = vsel %vm1526, %v1566, %v1567
  %v1597 = vmin.f32 %v1440, %v1527
  %v1598 = vmin.f32 %v1441, %v1529
  %v1599 = vmin.f32 %v1442, %v1530
  %v1600 = vmin.f32 %v1443, %v1532
  %v1601 = vmin.f32 %v1444, %v1533
  %v1602 = vmin.f32 %v1445, %v1535
  %v1603 = vmin.f32 %v1446, %v1536
  %v1604 = vmin.f32 %v1447, %v1538
  %v1605 = vmin.f32 %v1448, %v1539
  %v1606 = vmin.f32 %v1449, %v1541
  %v1607 = vmin.f32 %v1450, %v1542
  %v1608 = vmin.f32 %v1451, %v1544
  %v1609 = vmin.f32 %v1452, %v1545
  %v1610 = vmin.f32 %v1453, %v1547
  %v1611 = vmin.f32 %v1454, %v1548
  %v1612 = vmin.f32 %v1455, %v1550
  %v1613 = vmin.f32 %v1456, %v1551
  %v1614 = vmin.f32 %v1457, %v1553
  %v1615 = vmin.f32 %v1458, %v1554
  %v1616 = vmin.f32 %v1459, %v1556
  %v1617 = vmin.f32 %v1460, %v1557
  %v1618 = vmin.f32 %v1461, %v1559
  %v1619 = vmin.f32 %v1462, %v1560
  %v1620 = vmin.f32 %v1463, %v1562
  %v1621 = vmin.f32 %v1464, %v1563
  %v1622 = vmin.f32 %v1465, %v1565
  %v1623 = vmin.f32 %v1466, %v1566
  %v1624 = vmin.f32 %v1467, %v1568
  %v1625 = vmax.f32 %v1440, %v1527
  %v1626 = vmax.f32 %v1441, %v1529
  %v1627 = vmax.f32 %v1442, %v1530
  %v1628 = vmax.f32 %v1443, %v1532
  %v1629 = vmax.f32 %v1444, %v1533
  %v1630 = vmax.f32 %v1445, %v1535
  %v1631 = vmax.f32 %v1446, %v1536
  %v1632 = vmax.f32 %v1447, %v1538
  %v1633 = vmax.f32 %v1448, %v1539
  %v1634 = vmax.f32 %v1449, %v1541
  %v1635 = vmax.f32 %v1450, %v1542
  %v1636 = vmax.f32 %v1451, %v1544
  %v1637 = vmax.f32 %v1452, %v1545
  %v1638 = vmax.f32 %v1453, %v1547
  %v1639 = vmax.f32 %v1454, %v1548
  %v1640 = vmax.f32 %v1455, %v1550
  %v1641 = vmax.f32 %v1456, %v1551
  %v1642 = vmax.f32 %v1457, %v1553
  %v1643 = vmax.f32 %v1458, %v1554
  %v1644 = vmax.f32 %v1459, %v1556
  %v1645 = vmax.f32 %v1460, %v1557
  %v1646 = vmax.f32 %v1461, %v1559
  %v1647 = vmax.f32 %v1462, %v1560
  %v1648 = vmax.f32 %v1463, %v1562
  %v1649 = vmax.f32 %v1464, %v1563
  %v1650 = vmax.f32 %v1465, %v1565
  %v1651 = vmax.f32 %v1466, %v1566
  %v1652 = vmax.f32 %v1467, %v1568
  %v1681 = vrot.slane %v1597, 2
  %v1682 = vrot.slane %v1598, 2
  %v1683 = vsel %vm361, %v1681, %v1682
  %v1684 = vrot.slane %v1599, 2
  %v1685 = vrot.slane %v1600, 2
  %v1686 = vsel %vm361, %v1684, %v1685
  %v1687 = vrot.slane %v1601, 2
  %v1688 = vrot.slane %v1602, 2
  %v1689 = vsel %vm361, %v1687, %v1688
  %v1690 = vrot.slane %v1603, 2
  %v1691 = vrot.slane %v1604, 2
  %v1692 = vsel %vm361, %v1690, %v1691
  %v1693 = vrot.slane %v1605, 2
  %v1694 = vrot.slane %v1606, 2
  %v1695 = vsel %vm361, %v1693, %v1694
  %v1696 = vrot.slane %v1607, 2
  %v1697 = vrot.slane %v1608, 2
  %v1698 = vsel %vm361, %v1696, %v1697
  %v1699 = vrot.slane %v1609, 2
  %v1700 = vrot.slane %v1610, 2
  %v1701 = vsel %vm361, %v1699, %v1700
  %v1702 = vrot.slane %v1611, 2
  %v1703 = vrot.slane %v1612, 2
  %v1704 = vsel %vm361, %v1702, %v1703
  %v1705 = vrot.slane %v1613, 2
  %v1706 = vrot.slane %v1614, 2
  %v1707 = vsel %vm361, %v1705, %v1706
  %v1708 = vrot.slane %v1615, 2
  %v1709 = vrot.slane %v1616, 2
  %v1710 = vsel %vm361, %v1708, %v1709
  %v1711 = vrot.slane %v1617, 2
  %v1712 = vrot.slane %v1618, 2
  %v1713 = vsel %vm361, %v1711, %v1712
  %v1714 = vrot.slane %v1619, 2
  %v1715 = vrot.slane %v1620, 2
  %v1716 = vsel %vm361, %v1714, %v1715
  %v1717 = vrot.slane %v1621, 2
  %v1718 = vrot.slane %v1622, 2
  %v1719 = vsel %vm361, %v1717, %v1718
  %v1720 = vrot.slane %v1623, 2
  %v1721 = vrot.slane %v1624, 2
  %v1722 = vsel %vm361, %v1720, %v1721
  %v1751 = vmax.f32 %v1468, %v1683
  %v1752 = vmax.f32 %v1469, %v1682
  %v1753 = vmax.f32 %v1470, %v1686
  %v1754 = vmax.f32 %v1471, %v1685
  %v1755 = vmax.f32 %v1472, %v1689
  %v1756 = vmax.f32 %v1473, %v1688
  %v1757 = vmax.f32 %v1474, %v1692
  %v1758 = vmax.f32 %v1475, %v1691
  %v1759 = vmax.f32 %v1476, %v1695
  %v1760 = vmax.f32 %v1477, %v1694
  %v1761 = vmax.f32 %v1478, %v1698
  %v1762 = vmax.f32 %v1479, %v1697
  %v1763 = vmax.f32 %v1480, %v1701
  %v1764 = vmax.f32 %v1481, %v1700
  %v1765 = vmax.f32 %v1482, %v1704
  %v1766 = vmax.f32 %v1483, %v1703
  %v1767 = vmax.f32 %v1484, %v1707
  %v1768 = vmax.f32 %v1485, %v1706
  %v1769 = vmax.f32 %v1486, %v1710
  %v1770 = vmax.f32 %v1487, %v1709
  %v1771 = vmax.f32 %v1488, %v1713
  %v1772 = vmax.f32 %v1489, %v1712
  %v1773 = vmax.f32 %v1490, %v1716
  %v1774 = vmax.f32 %v1491, %v1715
  %v1775 = vmax.f32 %v1492, %v1719
  %v1776 = vmax.f32 %v1493, %v1718
  %v1777 = vmax.f32 %v1494, %v1722
  %v1778 = vmax.f32 %v1495, %v1721
  %v1807 = vrot.slane %v1625, 2
  %v1808 = vrot.slane %v1626, 2
  %v1809 = vsel %vm361, %v1807, %v1808
  %v1810 = vrot.slane %v1627, 2
  %v1811 = vrot.slane %v1628, 2
  %v1812 = vsel %vm361, %v1810, %v1811
  %v1813 = vrot.slane %v1629, 2
  %v1814 = vrot.slane %v1630, 2
  %v1815 = vsel %vm361, %v1813, %v1814
  %v1816 = vrot.slane %v1631, 2
  %v1817 = vrot.slane %v1632, 2
  %v1818 = vsel %vm361, %v1816, %v1817
  %v1819 = vrot.slane %v1633, 2
  %v1820 = vrot.slane %v1634, 2
  %v1821 = vsel %vm361, %v1819, %v1820
  %v1822 = vrot.slane %v1635, 2
  %v1823 = vrot.slane %v1636, 2
  %v1824 = vsel %vm361, %v1822, %v1823
  %v1825 = vrot.slane %v1637, 2
  %v1826 = vrot.slane %v1638, 2
  %v1827 = vsel %vm361, %v1825, %v1826
  %v1828 = vrot.slane %v1639, 2
  %v1829 = vrot.slane %v1640, 2
  %v1830 = vsel %vm361, %v1828, %v1829
  %v1831 = vrot.slane %v1641, 2
  %v1832 = vrot.slane %v1642, 2
  %v1833 = vsel %vm361, %v1831, %v1832
  %v1834 = vrot.slane %v1643, 2
  %v1835 = vrot.slane %v1644, 2
  %v1836 = vsel %vm361, %v1834, %v1835
  %v1837 = vrot.slane %v1645, 2
  %v1838 = vrot.slane %v1646, 2
  %v1839 = vsel %vm361, %v1837, %v1838
  %v1840 = vrot.slane %v1647, 2
  %v1841 = vrot.slane %v1648, 2
  %v1842 = vsel %vm361, %v1840, %v1841
  %v1843 = vrot.slane %v1649, 2
  %v1844 = vrot.slane %v1650, 2
  %v1845 = vsel %vm361, %v1843, %v1844
  %v1846 = vrot.slane %v1651, 2
  %v1847 = vrot.slane %v1652, 2
  %v1848 = vsel %vm361, %v1846, %v1847
  %v1877 = vmin.f32 %v1496, %v1809
  %v1878 = vmin.f32 %v1497, %v1808
  %v1879 = vmin.f32 %v1498, %v1812
  %v1880 = vmin.f32 %v1499, %v1811
  %v1881 = vmin.f32 %v1500, %v1815
  %v1882 = vmin.f32 %v1501, %v1814
  %v1883 = vmin.f32 %v1502, %v1818
  %v1884 = vmin.f32 %v1503, %v1817
  %v1885 = vmin.f32 %v1504, %v1821
  %v1886 = vmin.f32 %v1505, %v1820
  %v1887 = vmin.f32 %v1506, %v1824
  %v1888 = vmin.f32 %v1507, %v1823
  %v1889 = vmin.f32 %v1508, %v1827
  %v1890 = vmin.f32 %v1509, %v1826
  %v1891 = vmin.f32 %v1510, %v1830
  %v1892 = vmin.f32 %v1511, %v1829
  %v1893 = vmin.f32 %v1512, %v1833
  %v1894 = vmin.f32 %v1513, %v1832
  %v1895 = vmin.f32 %v1514, %v1836
  %v1896 = vmin.f32 %v1515, %v1835
  %v1897 = vmin.f32 %v1516, %v1839
  %v1898 = vmin.f32 %v1517, %v1838
  %v1899 = vmin.f32 %v1518, %v1842
  %v1900 = vmin.f32 %v1519, %v1841
  %v1901 = vmin.f32 %v1520, %v1845
  %v1902 = vmin.f32 %v1521, %v1844
  %v1903 = vmin.f32 %v1522, %v1848
  %v1904 = vmin.f32 %v1523, %v1847
  %v1905 = vmin.f32 %v1877, %v1751
  %v1906 = vmin.f32 %v1878, %v1752
  %v1907 = vmin.f32 %v1879, %v1753
  %v1908 = vmin.f32 %v1880, %v1754
  %v1909 = vmin.f32 %v1881, %v1755
  %v1910 = vmin.f32 %v1882, %v1756
  %v1911 = vmin.f32 %v1883, %v1757
  %v1912 = vmin.f32 %v1884, %v1758
  %v1913 = vmin.f32 %v1885, %v1759
  %v1914 = vmin.f32 %v1886, %v1760
  %v1915 = vmin.f32 %v1887, %v1761
  %v1916 = vmin.f32 %v1888, %v1762
  %v1917 = vmin.f32 %v1889, %v1763
  %v1918 = vmin.f32 %v1890, %v1764
  %v1919 = vmin.f32 %v1891, %v1765
  %v1920 = vmin.f32 %v1892, %v1766
  %v1921 = vmin.f32 %v1893, %v1767
  %v1922 = vmin.f32 %v1894, %v1768
  %v1923 = vmin.f32 %v1895, %v1769
  %v1924 = vmin.f32 %v1896, %v1770
  %v1925 = vmin.f32 %v1897, %v1771
  %v1926 = vmin.f32 %v1898, %v1772
  %v1927 = vmin.f32 %v1899, %v1773
  %v1928 = vmin.f32 %v1900, %v1774
  %v1929 = vmin.f32 %v1901, %v1775
  %v1930 = vmin.f32 %v1902, %v1776
  %v1931 = vmin.f32 %v1903, %v1777
  %v1932 = vmin.f32 %v1904, %v1778
  %v1933 = vmax.f32 %v1877, %v1751
  %v1934 = vmax.f32 %v1878, %v1752
  %v1935 = vmax.f32 %v1879, %v1753
  %v1936 = vmax.f32 %v1880, %v1754
  %v1937 = vmax.f32 %v1881, %v1755
  %v1938 = vmax.f32 %v1882, %v1756
  %v1939 = vmax.f32 %v1883, %v1757
  %v1940 = vmax.f32 %v1884, %v1758
  %v1941 = vmax.f32 %v1885, %v1759
  %v1942 = vmax.f32 %v1886, %v1760
  %v1943 = vmax.f32 %v1887, %v1761
  %v1944 = vmax.f32 %v1888, %v1762
  %v1945 = vmax.f32 %v1889, %v1763
  %v1946 = vmax.f32 %v1890, %v1764
  %v1947 = vmax.f32 %v1891, %v1765
  %v1948 = vmax.f32 %v1892, %v1766
  %v1949 = vmax.f32 %v1893, %v1767
  %v1950 = vmax.f32 %v1894, %v1768
  %v1951 = vmax.f32 %v1895, %v1769
  %v1952 = vmax.f32 %v1896, %v1770
  %v1953 = vmax.f32 %v1897, %v1771
  %v1954 = vmax.f32 %v1898, %v1772
  %v1955 = vmax.f32 %v1899, %v1773
  %v1956 = vmax.f32 %v1900, %v1774
  %v1957 = vmax.f32 %v1901, %v1775
  %v1958 = vmax.f32 %v1902, %v1776
  %v1959 = vmax.f32 %v1903, %v1777
  %v1960 = vmax.f32 %v1904, %v1778
  %v1961 = vrot.slane %v12, 2
  %v1962 = vrot.slane %v13, 2
  %v1963 = vsel %vm361, %v1961, %v1962
  %v1964 = vrot.slane %v14, 2
  %v1965 = vrot.slane %v15, 2
  %v1966 = vsel %vm361, %v1964, %v1965
  %v1967 = vrot.slane %v16, 2
  %v1968 = vrot.slane %v17, 2
  %v1969 = vsel %vm361, %v1967, %v1968
  %v1970 = vrot.slane %v18, 2
  %v1971 = vrot.slane %v19, 2
  %v1972 = vsel %vm361, %v1970, %v1971
  %v1973 = vrot.slane %v20, 2
  %v1974 = vrot.slane %v21, 2
  %v1975 = vsel %vm361, %v1973, %v1974
  %v1976 = vrot.slane %v22, 2
  %v1977 = vrot.slane %v23, 2
  %v1978 = vsel %vm361, %v1976, %v1977
  %v1979 = vrot.slane %v24, 2
  %v1980 = vrot.slane %v25, 2
  %v1981 = vsel %vm361, %v1979, %v1980
  %v1982 = vrot.slane %v26, 2
  %v1983 = vrot.slane %v27, 2
  %v1984 = vsel %vm361, %v1982, %v1983
  %v1985 = vrot.slane %v28, 2
  %v1986 = vrot.slane %v29, 2
  %v1987 = vsel %vm361, %v1985, %v1986
  %v1988 = vrot.slane %v30, 2
  %v1989 = vrot.slane %v31, 2
  %v1990 = vsel %vm361, %v1988, %v1989
  %v1991 = vrot.slane %v32, 2
  %v1992 = vrot.slane %v33, 2
  %v1993 = vsel %vm361, %v1991, %v1992
  %v1994 = vrot.slane %v34, 2
  %v1995 = vrot.slane %v35, 2
  %v1996 = vsel %vm361, %v1994, %v1995
  %v1997 = vrot.slane %v36, 2
  %v1998 = vrot.slane %v37, 2
  %v1999 = vsel %vm361, %v1997, %v1998
  %v2000 = vrot.slane %v38, 2
  %v2001 = vrot.slane %v39, 2
  %v2002 = vsel %vm361, %v2000, %v2001
  %v2031 = vmin.f32 %v1933, %v1963
  %v2032 = vmin.f32 %v1934, %v1962
  %v2033 = vmin.f32 %v1935, %v1966
  %v2034 = vmin.f32 %v1936, %v1965
  %v2035 = vmin.f32 %v1937, %v1969
  %v2036 = vmin.f32 %v1938, %v1968
  %v2037 = vmin.f32 %v1939, %v1972
  %v2038 = vmin.f32 %v1940, %v1971
  %v2039 = vmin.f32 %v1941, %v1975
  %v2040 = vmin.f32 %v1942, %v1974
  %v2041 = vmin.f32 %v1943, %v1978
  %v2042 = vmin.f32 %v1944, %v1977
  %v2043 = vmin.f32 %v1945, %v1981
  %v2044 = vmin.f32 %v1946, %v1980
  %v2045 = vmin.f32 %v1947, %v1984
  %v2046 = vmin.f32 %v1948, %v1983
  %v2047 = vmin.f32 %v1949, %v1987
  %v2048 = vmin.f32 %v1950, %v1986
  %v2049 = vmin.f32 %v1951, %v1990
  %v2050 = vmin.f32 %v1952, %v1989
  %v2051 = vmin.f32 %v1953, %v1993
  %v2052 = vmin.f32 %v1954, %v1992
  %v2053 = vmin.f32 %v1955, %v1996
  %v2054 = vmin.f32 %v1956, %v1995
  %v2055 = vmin.f32 %v1957, %v1999
  %v2056 = vmin.f32 %v1958, %v1998
  %v2057 = vmin.f32 %v1959, %v2002
  %v2058 = vmin.f32 %v1960, %v2001
  %v2059 = vmax.f32 %v1905, %v2031
  %v2060 = vmax.f32 %v1906, %v2032
  %v2061 = vmax.f32 %v1907, %v2033
  %v2062 = vmax.f32 %v1908, %v2034
  %v2063 = vmax.f32 %v1909, %v2035
  %v2064 = vmax.f32 %v1910, %v2036
  %v2065 = vmax.f32 %v1911, %v2037
  %v2066 = vmax.f32 %v1912, %v2038
  %v2067 = vmax.f32 %v1913, %v2039
  %v2068 = vmax.f32 %v1914, %v2040
  %v2069 = vmax.f32 %v1915, %v2041
  %v2070 = vmax.f32 %v1916, %v2042
  %v2071 = vmax.f32 %v1917, %v2043
  %v2072 = vmax.f32 %v1918, %v2044
  %v2073 = vmax.f32 %v1919, %v2045
  %v2074 = vmax.f32 %v1920, %v2046
  %v2075 = vmax.f32 %v1921, %v2047
  %v2076 = vmax.f32 %v1922, %v2048
  %v2077 = vmax.f32 %v1923, %v2049
  %v2078 = vmax.f32 %v1924, %v2050
  %v2079 = vmax.f32 %v1925, %v2051
  %v2080 = vmax.f32 %v1926, %v2052
  %v2081 = vmax.f32 %v1927, %v2053
  %v2082 = vmax.f32 %v1928, %v2054
  %v2083 = vmax.f32 %v1929, %v2055
  %v2084 = vmax.f32 %v1930, %v2056
  %v2085 = vmax.f32 %v1931, %v2057
  %v2086 = vmax.f32 %v1932, %v2058
  %vm2087 = vcmask 64512
  %2088 = vst.msk [vmem:[%s1] sm:$0xff] %vm2087, %v2059
  %vm2089 = vcmask 62464
  %2090 = vst.msk [vmem:[%s1 + $0x8] sm:$0x3f] %vm2089, %v2060
  %2091 = vst.msk [vmem:[%s1 + $0x10] sm:$0xff] %vm2087, %v2061
  %2092 = vst.msk [vmem:[%s1 + $0x18] sm:$0x3f] %vm2089, %v2062
  %2093 = vst.msk [vmem:[%s1 + $0x20] sm:$0xff] %vm2087, %v2063
  %2094 = vst.msk [vmem:[%s1 + $0x28] sm:$0x3f] %vm2089, %v2064
  %2095 = vst.msk [vmem:[%s1 + $0x30] sm:$0xff] %vm2087, %v2065
  %2096 = vst.msk [vmem:[%s1 + $0x38] sm:$0x3f] %vm2089, %v2066
  %2097 = vst.msk [vmem:[%s1 + $0x40] sm:$0xff] %vm2087, %v2067
  %2098 = vst.msk [vmem:[%s1 + $0x48] sm:$0x3f] %vm2089, %v2068
  %2099 = vst.msk [vmem:[%s1 + $0x50] sm:$0xff] %vm2087, %v2069
  %2100 = vst.msk [vmem:[%s1 + $0x58] sm:$0x3f] %vm2089, %v2070
  %2101 = vst.msk [vmem:[%s1 + $0x60] sm:$0xff] %vm2087, %v2071
  %2102 = vst.msk [vmem:[%s1 + $0x68] sm:$0x3f] %vm2089, %v2072
  %2103 = vst.msk [vmem:[%s1 + $0x70] sm:$0xff] %vm2087, %v2073
  %2104 = vst.msk [vmem:[%s1 + $0x78] sm:$0x3f] %vm2089, %v2074
  %2105 = vst.msk [vmem:[%s1 + $0x80] sm:$0xff] %vm2087, %v2075
  %2106 = vst.msk [vmem:[%s1 + $0x88] sm:$0x3f] %vm2089, %v2076
  %2107 = vst.msk [vmem:[%s1 + $0x90] sm:$0xff] %vm2087, %v2077
  %2108 = vst.msk [vmem:[%s1 + $0x98] sm:$0x3f] %vm2089, %v2078
  %2109 = vst.msk [vmem:[%s1 + $0xa0] sm:$0xff] %vm2087, %v2079
  %2110 = vst.msk [vmem:[%s1 + $0xa8] sm:$0x3f] %vm2089, %v2080
  %2111 = vst.msk [vmem:[%s1 + $0xb0] sm:$0xff] %vm2087, %v2081
  %2112 = vst.msk [vmem:[%s1 + $0xb8] sm:$0x3f] %vm2089, %v2082
  %2113 = vst.msk [vmem:[%s1 + $0xc0] sm:$0xff] %vm2087, %v2083
  %2114 = vst.msk [vmem:[%s1 + $0xc8] sm:$0x3f] %vm2089, %v2084
  %2115 = vst.msk [vmem:[%s1 + $0xd0] sm:$0xff] %vm2087, %v2085
  %2116 = vst.msk [vmem:[%s1 + $0xd8] sm:$0x3f] %vm2089, %v2086
  // Predicated region
  $region6: #{_median_pool2d_impl.1} parent=0 // pred_check
    _
  $region7: #{_median_pool2d_impl.1} parent=0 // pred_check_branch
    %2118 = sbr.rel (0) target = $region9
  $region8: #{_median_pool2d_impl.1} parent=0 // pred_region
    _
  $region9: #{_median_pool2d_impl.1} parent=0 // pred_fallthru
    _
  // Predicated region
  $region10: #{_median_pool2d_impl.1} parent=0 // pred_check
    _
  $region11: #{_median_pool2d_impl.1} parent=0 // pred_check_branch
    %2120 = sbr.rel (0) target = $region13
  $region12: #{_median_pool2d_impl.1} parent=0 // pred_region
    _
  $region13: #{_median_pool2d_impl.1} parent=0 // pred_fallthru
    _

</llo_original>
